<compile_context>
chip_gen: v5e
topology: v5e:2x2
jax: 0.10.0
libtpu: 0.0.40
codegen_flags: <defaults>
</compile_context>

<pallas_src>
import math
from math import gcd

import numpy as np

import jax
import jax.numpy as jnp
from jax.experimental import pallas as pl
from jax.experimental.pallas import tpu as pltpu


# ----------------------------------------------------------------------------
# Parameter construction (mirrors PositionalEncoding.__init__ exactly)
# ----------------------------------------------------------------------------
def make_freqs(pos_dim: int, ch: int, denominator: float = 10000.0) -> np.ndarray:
    assert ch % (pos_dim * 2) == 0, (
        "dimension of positional encoding must be equal to dim * 2."
    )
    enc_dim = ch // 2
    div_term = np.exp(
        np.arange(0.0, enc_dim, 2.0, dtype=np.float64)
        * (-(math.log(denominator) / enc_dim))
    ).astype(np.float32)
    freqs = np.zeros((pos_dim, enc_dim), dtype=np.float32)
    freqs[:, : enc_dim // 2] = div_term
    freqs[:, enc_dim // 2 :] = div_term
    return freqs


def _round_up(x: int, m: int) -> int:
    return ((x + m - 1) // m) * m


# ----------------------------------------------------------------------------
# Pallas wrapper: packed, tiled, MXU-contraction + single-sin kernel
# ----------------------------------------------------------------------------
def positional_encoding(
    pos: jnp.ndarray,
    freqs,
    *,
    tile_rows: int = 8192,          # packed rows per grid step (upper bound)
    out_dtype=jnp.float32,
) -> jnp.ndarray:
    """pos: (..., pos_dim) float/int -> (..., ch) out_dtype."""
    freqs_np = np.asarray(freqs, dtype=np.float32)
    pos_dim, enc_dim = freqs_np.shape
    ch = 2 * enc_dim
    assert pos.shape[-1] == pos_dim

    lead = pos.shape[:-1]
    n = int(np.prod(lead, dtype=np.int64)) if lead else 1

    # ---- lane-dense packing: out_w = lcm(ch, 128) is a multiple of 128 ----
    lcm = ch * 128 // gcd(ch, 128)
    if lcm <= 2048:
        pack = lcm // ch
    else:
        # TODO(synk): pathological ch (huge lcm with 128) falls back to masked
        # partial stores; could pad out_w to a 128-multiple and slice instead.
        pack = 1
    out_w = pack * ch
    n_terms = pack * pos_dim
    # K of the contraction = n_terms + 1 (pi/2 bias row), padded to a sublane
    # multiple so the MXU sees an aligned K.
    k_pad = _round_up(n_terms + 1, 8)

    # ---- tile selection: VMEM budget, megacore (>=2 steps), minimal padding --
    out_itemsize = np.dtype(out_dtype).itemsize
    sub = 16 if out_itemsize == 2 else 8          # bf16 sublane packing
    lane_k = _round_up(k_pad, 128)                # input block lane-pads in VMEM
    lane_w = _round_up(out_w, 128)
    bytes_per_row = 2 * (lane_k * 4 + lane_w * out_itemsize)  # double-buffered
    vmem_budget = 40 << 20                        # safe on v7x's 64 MiB VMEM
    max_tile = max(sub, (vmem_budget // bytes_per_row) // sub * sub)

    n_packed = -(-n // pack)                      # ceil
    n_base = _round_up(max(n_packed, 1), sub)
    tile = max(sub, min((int(tile_rows) // sub) * sub, max_tile, n_base))
    if n_base >= 2 * sub:
        # Ensure >= 2 grid steps so both v7x TensorCores get work.
        tile = min(tile, _round_up(-(-n_base // 2), sub))
    steps = -(-n_base // tile)
    # Re-balance so padding past the data stays small (cheap/absent post-slice).
    tile = _round_up(-(-n_base // steps), sub)
    n_packed_pad = tile * steps
    n_pad = n_packed_pad * pack

    # ---- wrapper-side layout: packed rows + ones column for the pi/2 bias ----
    pos2d = pos.astype(jnp.float32).reshape(n, pos_dim)
    if n_pad != n:
        pos2d = jnp.pad(pos2d, ((0, n_pad - n), (0, 0)))
    # Row-major packing: packed row r = [pos[r*pack+k, i] for k for i]
    pos_packed = pos2d.reshape(n_packed_pad, n_terms)
    cols = [pos_packed, jnp.ones((n_packed_pad, 1), jnp.float32)]
    if k_pad > n_terms + 1:
        cols.append(jnp.zeros((n_packed_pad, k_pad - n_terms - 1), jnp.float32))
    pos_aug = jnp.concatenate(cols, axis=-1)      # (n_packed_pad, k_pad)

    # Coefficient table: exact matmul restructured block-diagonally, plus a
    # constant bias row (pi/2 on the cos columns) so cos(x) = sin(x + pi/2)
    # and the kernel evaluates ONE transcendental per output lane.
    coeff = np.zeros((k_pad, out_w), dtype=np.float32)
    for k in range(pack):
        base = k * ch
        for i in range(pos_dim):
            t = k * pos_dim + i
            coeff[t, base : base + enc_dim] = freqs_np[i]
            coeff[t, base + enc_dim : base + ch] = freqs_np[i]
        coeff[n_terms, base + enc_dim : base + ch] = np.float32(math.pi / 2)
    coeff_j = jnp.asarray(coeff)

    def kernel(pos_ref, coeff_ref, out_ref):
        # pos_ref:   (tile, k_pad)  f32  (lane-padded in VMEM; budgeted above)
        # coeff_ref: (k_pad, out_w) f32  (single tiny tile, identical each step)
        # out_ref:   (tile, out_w)  out_dtype  (lane-dense, unmasked stores)
        phase = jnp.dot(
            pos_ref[...],
            coeff_ref[...],
            preferred_element_type=jnp.float32,
            precision=jax.lax.Precision.HIGHEST,   # keep full f32 phase accuracy
        )                                          # rides the otherwise-idle MXU
        out_ref[...] = jnp.sin(phase).astype(out_ref.dtype)

    in_buf = tile * lane_k * 4
    out_buf = tile * lane_w * out_itemsize
    coeff_buf = k_pad * lane_w * 4
    vmem_limit = max(2 * (in_buf + out_buf + coeff_buf) + (4 << 20), 32 << 20)

    out = pl.pallas_call(
        kernel,
        out_shape=jax.ShapeDtypeStruct((n_packed_pad, out_w), out_dtype),
        grid=(steps,),
        in_specs=[
            pl.BlockSpec((tile, k_pad), lambda i: (i, 0)),
            pl.BlockSpec((k_pad, out_w), lambda i: (0, 0)),
        ],
        # pipeline_mode=pl.Buffered(3) on out_specs only if a trace ever shows
        # exposed output DMA (kernel should be compute-dominated post-fix).
        out_specs=pl.BlockSpec((tile, out_w), lambda i: (i, 0)),
        compiler_params=pltpu.CompilerParams(
            dimension_semantics=("parallel",),
            vmem_limit_bytes=int(vmem_limit),
        ),
    )(pos_aug, coeff_j)

    # (n_packed_pad, pack*ch) -> (n_pad, ch) is a contiguous, bitwise reshape.
    out = out.reshape(n_pad, ch)
    if n_pad != n:
        out = out[:n]   # consumers that tolerate trailing padding can skip this
    return out.reshape(*lead, ch)


# ----------------------------------------------------------------------------
# Reference (pure JAX, faithful to the PyTorch forward)
# ----------------------------------------------------------------------------
def positional_encoding_ref(pos: jnp.ndarray, freqs) -> jnp.ndarray:
    pe = jnp.matmul(
        pos.astype(jnp.float32),
        jnp.asarray(freqs, dtype=jnp.float32),
        precision=jax.lax.Precision.HIGHEST,
    )
    return jnp.concatenate([jnp.sin(pe), jnp.cos(pe)], axis=-1)


if __name__ == "__main__":
    # Module config: pos_dim=2, ch=32  (ch % (pos_dim*2) == 0)
    pos_dim, ch = 2, 32
    freqs = make_freqs(pos_dim, ch, denominator=10000.0)

    # Example positions: batch=2, seq=8, pos_dim=2
    key = jax.random.PRNGKey(0)
    pos = jax.random.uniform(key, (2, 8, pos_dim), dtype=jnp.float32) * 16.0

    out = jax.block_until_ready(positional_encoding(pos, freqs))
    ref = positional_encoding_ref(pos, freqs)
    assert out.shape == (2, 8, ch), out.shape
    assert out.dtype == jnp.float32
    assert jnp.allclose(out, ref, atol=2e-5, rtol=2e-5), float(
        jnp.max(jnp.abs(out - ref))
    )

    # Exercise the multi-step grid path (parallel axis, >= 2 steps).
    key2 = jax.random.PRNGKey(1)
    pos2 = jax.random.uniform(key2, (2, 256, pos_dim), dtype=jnp.float32) * 16.0
    out2 = jax.block_until_ready(positional_encoding(pos2, freqs, tile_rows=32))
    ref2 = positional_encoding_ref(pos2, freqs)
    assert out2.shape == (2, 256, ch)
    assert jnp.allclose(out2, ref2, atol=2e-5, rtol=2e-5), float(
        jnp.max(jnp.abs(out2 - ref2))
    )

    print("KERNEL_OK")
</pallas_src>

<mosaic_0001>
module attributes {stable_mosaic.version = 11 : i64} {
  func.func @kernel(%arg0: i32, %arg1: memref<8x16xf32, #tpu.memory_space<vmem>>, %arg2: memref<16x128xf32, #tpu.memory_space<vmem>>, %arg3: memref<8x128xf32, #tpu.memory_space<vmem>>) attributes {dimension_semantics = [#tpu.dimension_semantics<parallel>], iteration_bounds = array<i64: 1>, scalar_prefetch = 0 : i64, scratch_operands = 0 : i64, tpu.core_type = #tpu.core_type<tc>, window_params = [{transform_indices = @transform_0, window_bounds = array<i64: 8, 16>}, {pipeline_mode = #tpu.pipeline_mode<synchronous>, transform_indices = @transform_1, window_bounds = array<i64: 16, 128>}, {transform_indices = @transform_2, window_bounds = array<i64: 8, 128>}]} {
    %c0 = arith.constant 0 : index
    %c0_0 = arith.constant 0 : index
    %0 = vector.load %arg1[%c0, %c0_0] : memref<8x16xf32, #tpu.memory_space<vmem>>, vector<8x16xf32>
    %c0_1 = arith.constant 0 : index
    %c0_2 = arith.constant 0 : index
    %1 = vector.load %arg2[%c0_1, %c0_2] : memref<16x128xf32, #tpu.memory_space<vmem>>, vector<16x128xf32>
    %cst = arith.constant dense<0.000000e+00> : vector<8x128xf32>
    %2 = tpu.matmul %0, %1, %cst {dimension_numbers = #tpu.dot_dimension_numbers<[1], [0], [0], [1], [0, 0, 1, 1], [], []>, precision = #tpu.contract_precision<fp32>} : vector<8x16xf32>, vector<16x128xf32>, vector<8x128xf32> -> vector<8x128xf32>
    %3 = math.sin %2 : vector<8x128xf32>
    %c0_3 = arith.constant 0 : index
    %c0_4 = arith.constant 0 : index
    %4 = vector.load %arg3[%c0_3, %c0_4] : memref<8x128xf32, #tpu.memory_space<vmem>>, vector<8x128xf32>
    tpu.vector_store %arg3[%c0_3, %c0_4], %3 {strides = array<i32>} : memref<8x128xf32, #tpu.memory_space<vmem>>, vector<8x128xf32>,
    return
  }
  func.func @transform_0(%arg0: i32) -> (i32, i32) {
    %c0_i32 = arith.constant 0 : i32
    %c0_i32_0 = arith.constant 0 : i32
    return %arg0, %c0_i32 : i32, i32
  }
  func.func @transform_1(%arg0: i32) -> (i32, i32) {
    %c0_i32 = arith.constant 0 : i32
    %c0_i32_0 = arith.constant 0 : i32
    %c0_i32_1 = arith.constant 0 : i32
    return %c0_i32, %c0_i32_0 : i32, i32
  }
  func.func @transform_2(%arg0: i32) -> (i32, i32) {
    %c0_i32 = arith.constant 0 : i32
    %c0_i32_0 = arith.constant 0 : i32
    return %arg0, %c0_i32 : i32, i32
  }
}

</mosaic_0001>

<llo_original>
// kernel: tpu_custom_call.1
$region0: #{tpu_custom_call.1}
  #allocation0 [shape = 'u32[]', space=smem, size = 0x4, offset = 0x4, fixed_abs, tag = 'smem constant byte address 0x4 - core index']
  #allocation1 [shape = 'u32[72,128]{1,0:T(1,128)}', space=vmem, size = 0x9000, scoped, tag = 'internal scratch']
  %s0 = inlined_call_operand.hbm [shape: f32[8,16], index: 0, kind: input, shape index: {}]
  %s1 = inlined_call_operand.hbm [shape: f32[16,128], index: 1, kind: input, shape index: {}]
  %s2 = inlined_call_operand.hbm [shape: f32[8,128], index: 2, kind: output, shape index: {}]
  %s3 = sld [smem:[#allocation0]]
  $region26: #{tpu_custom_call.1} parent=0
    _
  %s5 = ssub.s32 1, %s3
  %s6 = scalar_select 0, %s5, %s3
  $region1: #{tpu_custom_call.1} parent=0
    #allocation2 [shape = 'u8[4096]{0}', space=vmem, size = 0x1000, scoped, tag = 'input window, operand 0, single buffered']
    #allocation3 [shape = 's32[1]{0}', space=sflag, size = 0x4, scoped, tag = 'scoped memory for tpu_custom_call.1']
    #allocation4 [shape = 's32[1]{0}', space=sflag, size = 0x4, scoped, tag = 'scoped memory for tpu_custom_call.1']
    #allocation5 [shape = 'u8[8192]{0}', space=vmem, size = 0x2000, scoped, tag = 'input window, operand 1, single buffered']
    #allocation6 [shape = 's32[1]{0}', space=sflag, size = 0x4, scoped, tag = 'scoped memory for tpu_custom_call.1']
    #allocation7 [shape = 'u8[4096]{0}', space=vmem, size = 0x1000, scoped, tag = 'output window, operand 0, single buffered']
    %7 = vsyncpa [#allocation3], 0
    %8 = vsyncpa [#allocation6], 0
    %9 = vsyncpa [#allocation4], 0
    // Predicated region
    $region2: #{tpu_custom_call.1} parent=1 // pred_check
      _
    $region3: #{tpu_custom_call.1} parent=1 // pred_check_branch
      %11 = sbr.rel (0) target = $region5
    $region4: #{tpu_custom_call.1} parent=1 // pred_region
      %13 = vsyncadd [#allocation3], 0
      %s15 = sshll.u32 %s0, 4
      %s16 = int_to_ptr.hbm [resolvable:$true] %s15
      %s17 = sshll.u32 [#allocation2], 4
      %s18 = int_to_ptr.vmem [resolvable:$true] %s17
      %20 = dma.hbm_to_vmem [thread:$0]  %s16, 128, %s18, [#allocation3]
    $region5: #{tpu_custom_call.1} parent=1 // pred_fallthru
      _
    // Predicated region
    $region6: #{tpu_custom_call.1} parent=1 // pred_check
      _
    $region7: #{tpu_custom_call.1} parent=1 // pred_check_branch
      %22 = sbr.rel (0) target = $region9
    $region8: #{tpu_custom_call.1} parent=1 // pred_region
      %24 = vsyncadd [#allocation6], 0
      %s25 = sshll.u32 %s1, 4
      %s26 = int_to_ptr.hbm [resolvable:$true] %s25
      %s27 = sshll.u32 [#allocation5], 4
      %s28 = int_to_ptr.vmem [resolvable:$true] %s27
      %33 = dma.hbm_to_vmem [thread:$0]  %s26, 256, %s28, [#allocation6], 128, 128, 8
    $region9: #{tpu_custom_call.1} parent=1 // pred_fallthru
      _
    // Predicated region
    $region10: #{tpu_custom_call.1} parent=1 // pred_check
      _
    $region11: #{tpu_custom_call.1} parent=1 // pred_check_branch
      %35 = sbr.rel (0) target = $region13
    $region12: #{tpu_custom_call.1} parent=1 // pred_region
      %37 = dma.done [#allocation3], 128
    $region13: #{tpu_custom_call.1} parent=1 // pred_fallthru
      _
    // Predicated region
    $region14: #{tpu_custom_call.1} parent=1 // pred_check
      _
    $region15: #{tpu_custom_call.1} parent=1 // pred_check_branch
      %39 = sbr.rel (0) target = $region17
    $region16: #{tpu_custom_call.1} parent=1 // pred_region
      %41 = dma.done [#allocation6], 256
    $region17: #{tpu_custom_call.1} parent=1 // pred_fallthru
      _
    %v42 = vld [vmem:[#allocation2] sm:$0xff]
    %v43 = vld [vmem:[#allocation5] sm:$0xff]
    %v44 = vld [vmem:[#allocation5 + $0x8] sm:$0xff]
    %vm45 = vcmask 130048
    %v47 = vsel %vm45, %v42, 0
    %49 = vmatpush.msra.mxu0 0.0
    %50 = vmatpush.msra.mxu0 0.0
    %51 = vmatpush.msra.mxu0 0.0
    %52 = vmatpush.msra.mxu0 0.0
    %53 = vmatpush.msra.mxu0 0.0
    %54 = vmatpush.msra.mxu0 0.0
    %55 = vmatpush.msra.mxu0 0.0
    %56 = vmatpush.msra.mxu0 0.0
    %57 = vmatpush.msra.mxu0 0.0
    %58 = vmatpush.msra.mxu0 0.0
    %59 = vmatpush.msra.mxu0 0.0
    %60 = vmatpush.msra.mxu0 0.0
    %61 = vmatpush.msra.mxu0 0.0
    %62 = vmatpush.msra.mxu0 0.0
    %v63 = vand.u32 %v44, 4294901760
    %64 = vmatpush.msra.mxu0 %v63
    %v65 = vand.u32 %v43, 4294901760
    %66 = vmatpush.msra.mxu0 %v65
    %v67 = vand.u32 %v47, 4294901760
    %v68 = vsub.f32 %v47, %v67
    %v69 = vand.u32 %v68, 4294901760
    %v70 = vsub.f32 %v68, %v69
    %v71 = vand.u32 %v70, 4294901760
    %72 = vmatmul.f32.gmra.mxu0 %v71
    %v73 = vpop.f32.mrf.mxu0
    %v74 = vadd.f32 0.0, %v73
    %75 = vdwg.mxu0
    %76 = vmatpush.msra.mxu0 0.0
    %77 = vmatpush.msra.mxu0 0.0
    %78 = vmatpush.msra.mxu0 0.0
    %79 = vmatpush.msra.mxu0 0.0
    %80 = vmatpush.msra.mxu0 0.0
    %81 = vmatpush.msra.mxu0 0.0
    %82 = vmatpush.msra.mxu0 0.0
    %83 = vmatpush.msra.mxu0 0.0
    %84 = vmatpush.msra.mxu0 0.0
    %85 = vmatpush.msra.mxu0 0.0
    %86 = vmatpush.msra.mxu0 0.0
    %87 = vmatpush.msra.mxu0 0.0
    %88 = vmatpush.msra.mxu0 0.0
    %89 = vmatpush.msra.mxu0 0.0
    %v90 = vand.u32 %v44, 4294901760
    %v91 = vsub.f32 %v44, %v90
    %v92 = vand.u32 %v91, 4294901760
    %v93 = vsub.f32 %v91, %v92
    %v94 = vand.u32 %v93, 4294901760
    %95 = vmatpush.msra.mxu0 %v94
    %v96 = vand.u32 %v43, 4294901760
    %v97 = vsub.f32 %v43, %v96
    %v98 = vand.u32 %v97, 4294901760
    %v99 = vsub.f32 %v97, %v98
    %v100 = vand.u32 %v99, 4294901760
    %101 = vmatpush.msra.mxu0 %v100
    %v102 = vand.u32 %v47, 4294901760
    %103 = vmatmul.f32.gmra.mxu0 %v102
    %v104 = vpop.f32.mrf.mxu0
    %v105 = vadd.f32 %v74, %v104
    %106 = vdwg.mxu0
    %107 = vmatpush.msra.mxu0 0.0
    %108 = vmatpush.msra.mxu0 0.0
    %109 = vmatpush.msra.mxu0 0.0
    %110 = vmatpush.msra.mxu0 0.0
    %111 = vmatpush.msra.mxu0 0.0
    %112 = vmatpush.msra.mxu0 0.0
    %113 = vmatpush.msra.mxu0 0.0
    %114 = vmatpush.msra.mxu0 0.0
    %115 = vmatpush.msra.mxu0 0.0
    %116 = vmatpush.msra.mxu0 0.0
    %117 = vmatpush.msra.mxu0 0.0
    %118 = vmatpush.msra.mxu0 0.0
    %119 = vmatpush.msra.mxu0 0.0
    %120 = vmatpush.msra.mxu0 0.0
    %v121 = vand.u32 %v44, 4294901760
    %v122 = vsub.f32 %v44, %v121
    %123 = vmatpush.msra.mxu0 %v122
    %v124 = vand.u32 %v43, 4294901760
    %v125 = vsub.f32 %v43, %v124
    %126 = vmatpush.msra.mxu0 %v125
    %v127 = vand.u32 %v47, 4294901760
    %v128 = vsub.f32 %v47, %v127
    %129 = vmatmul.f32.gmra.mxu0 %v128
    %v130 = vpop.f32.mrf.mxu0
    %v131 = vadd.f32 %v105, %v130
    %132 = vdwg.mxu0
    %133 = vmatpush.msra.mxu0 0.0
    %134 = vmatpush.msra.mxu0 0.0
    %135 = vmatpush.msra.mxu0 0.0
    %136 = vmatpush.msra.mxu0 0.0
    %137 = vmatpush.msra.mxu0 0.0
    %138 = vmatpush.msra.mxu0 0.0
    %139 = vmatpush.msra.mxu0 0.0
    %140 = vmatpush.msra.mxu0 0.0
    %141 = vmatpush.msra.mxu0 0.0
    %142 = vmatpush.msra.mxu0 0.0
    %143 = vmatpush.msra.mxu0 0.0
    %144 = vmatpush.msra.mxu0 0.0
    %145 = vmatpush.msra.mxu0 0.0
    %146 = vmatpush.msra.mxu0 0.0
    %v147 = vand.u32 %v44, 4294901760
    %148 = vmatpush.msra.mxu0 %v147
    %v149 = vand.u32 %v43, 4294901760
    %150 = vmatpush.msra.mxu0 %v149
    %v151 = vand.u32 %v47, 4294901760
    %v152 = vsub.f32 %v47, %v151
    %v153 = vand.u32 %v152, 4294901760
    %154 = vmatmul.f32.gmra.mxu0 %v153
    %v155 = vpop.f32.mrf.mxu0
    %v156 = vadd.f32 %v131, %v155
    %157 = vdwg.mxu0
    %158 = vmatpush.msra.mxu0 0.0
    %159 = vmatpush.msra.mxu0 0.0
    %160 = vmatpush.msra.mxu0 0.0
    %161 = vmatpush.msra.mxu0 0.0
    %162 = vmatpush.msra.mxu0 0.0
    %163 = vmatpush.msra.mxu0 0.0
    %164 = vmatpush.msra.mxu0 0.0
    %165 = vmatpush.msra.mxu0 0.0
    %166 = vmatpush.msra.mxu0 0.0
    %167 = vmatpush.msra.mxu0 0.0
    %168 = vmatpush.msra.mxu0 0.0
    %169 = vmatpush.msra.mxu0 0.0
    %170 = vmatpush.msra.mxu0 0.0
    %171 = vmatpush.msra.mxu0 0.0
    %v172 = vand.u32 %v44, 4294901760
    %v173 = vsub.f32 %v44, %v172
    %v174 = vand.u32 %v173, 4294901760
    %175 = vmatpush.msra.mxu0 %v174
    %v176 = vand.u32 %v43, 4294901760
    %v177 = vsub.f32 %v43, %v176
    %v178 = vand.u32 %v177, 4294901760
    %179 = vmatpush.msra.mxu0 %v178
    %v180 = vand.u32 %v47, 4294901760
    %181 = vmatmul.f32.gmra.mxu0 %v180
    %v182 = vpop.f32.mrf.mxu0
    %v183 = vadd.f32 %v156, %v182
    %184 = vdwg.mxu0
    %185 = vmatpush.msra.mxu0 0.0
    %186 = vmatpush.msra.mxu0 0.0
    %187 = vmatpush.msra.mxu0 0.0
    %188 = vmatpush.msra.mxu0 0.0
    %189 = vmatpush.msra.mxu0 0.0
    %190 = vmatpush.msra.mxu0 0.0
    %191 = vmatpush.msra.mxu0 0.0
    %192 = vmatpush.msra.mxu0 0.0
    %193 = vmatpush.msra.mxu0 0.0
    %194 = vmatpush.msra.mxu0 0.0
    %195 = vmatpush.msra.mxu0 0.0
    %196 = vmatpush.msra.mxu0 0.0
    %197 = vmatpush.msra.mxu0 0.0
    %198 = vmatpush.msra.mxu0 0.0
    %v199 = vand.u32 %v44, 4294901760
    %200 = vmatpush.msra.mxu0 %v199
    %v201 = vand.u32 %v43, 4294901760
    %202 = vmatpush.msra.mxu0 %v201
    %v203 = vand.u32 %v47, 4294901760
    %204 = vmatmul.f32.gmra.mxu0 %v203
    %v205 = vpop.f32.mrf.mxu0
    %v206 = vadd.f32 %v183, %v205
    %207 = vdwg.mxu0
    %v208 = vand.u32 2147483647, %v206
    %vm209 = vcmp.le.f32.partialorder %v208, 0.7853982
    %vm210 = vcmp.lt.s32.totalorder %v206, 0
    %v211 = vand.u32 %v206, 2139095040
    %v212 = vshrl.u32 %v211, 23
    %v213 = vsub.s32 %v212, 127
    %v214 = vand.u32 2147483647, %v206
    %v215 = vand.u32 %v214, 8388607
    %v216 = vor.u32 %v215, 8388608
    %v217 = vsub.s32 0, %v216
    %v218 = vadd.s32 %v213, 1
    %vm219 = vcmp.gt.s32.totalorder %v218, 0
    %v220 = vsel %vm219, %v218, 0
    %v221 = vshrl.u32 %v220, 5
    %v222 = vand.u32 %v220, 31
    %v223 = vsub.s32 32, %v222
    %v224 = vshrl.u32 683565275, %v223
    %v225 = vshll.u32 683565275, %v222
    %v226 = vshrl.u32 2475754826, %v223
    %v227 = vor.u32 %v225, %v226
    %v228 = vshll.u32 2475754826, %v222
    %v229 = vshrl.u32 2131351028, %v223
    %v230 = vor.u32 %v228, %v229
    %v231 = vshll.u32 2131351028, %v222
    %v232 = vshrl.u32 2102212464, %v223
    %v233 = vor.u32 %v231, %v232
    %v234 = vshll.u32 2102212464, %v222
    %v235 = vshrl.u32 920167782, %v223
    %v236 = vor.u32 %v234, %v235
    %v237 = vshll.u32 920167782, %v222
    %v238 = vshrl.u32 1326507024, %v223
    %v239 = vor.u32 %v237, %v238
    %vm240 = vcmp.lt.s32.totalorder %v221, 1
    %vm241 = vcmp.lt.s32.totalorder %v221, 2
    %vm242 = vcmp.lt.s32.totalorder %v221, 3
    %vm243 = vcmp.lt.s32.totalorder %v221, 4
    %v244 = vsel %vm240, %v224, %v227
    %v245 = vsel %vm243, %v233, 2102212464
    %v246 = vsel %vm242, %v230, %v245
    %v247 = vsel %vm241, %v244, %v246
    %v248 = vsel %vm240, %v227, %v230
    %v249 = vsel %vm243, %v236, 920167782
    %v250 = vsel %vm242, %v233, %v249
    %v251 = vsel %vm241, %v248, %v250
    %v252 = vsel %vm240, %v230, %v233
    %v253 = vsel %vm243, %v239, 1326507024
    %v254 = vsel %vm242, %v236, %v253
    %v255 = vsel %vm241, %v252, %v254
    %v256 = vshll.u32 %v216, 8
    %v257 = vand.u32 %v256, 65535
    %v258 = vshrl.u32 %v256, 16
    %v259 = vand.u32 %v255, 65535
    %v260 = vshrl.u32 %v255, 16
    %v261 = vmul.u32 %v257, %v259
    %v262 = vmul.u32 %v257, %v260
    %v263 = vmul.u32 %v258, %v259
    %v264 = vmul.u32 %v258, %v260
    %v265 = vshll.u32 %v262, 16
    %v266 = vshrl.u32 %v262, 16
    %v267 = vshll.u32 %v263, 16
    %v268 = vshrl.u32 %v263, 16
    %vm269 = vc.u32 %v261, %v265
    %v270 = vsel %vm269, 1, 0
    %v271 = vadd.s32 %v261, %v265
    %v272 = vadd.s32 %v264, %v270
    %vm273 = vc.u32 %v271, %v267
    %v274 = vsel %vm273, 1, 0
    %v275 = vadd.s32 %v271, %v267
    %v276 = vadd.s32 %v272, %v274
    %v277 = vadd.s32 %v276, %v266
    %v278 = vadd.s32 %v277, %v268
    %v279 = vand.u32 %v256, 65535
    %v280 = vshrl.u32 %v256, 16
    %v281 = vand.u32 %v251, 65535
    %v282 = vshrl.u32 %v251, 16
    %v283 = vmul.u32 %v279, %v281
    %v284 = vmul.u32 %v279, %v282
    %v285 = vmul.u32 %v280, %v281
    %v286 = vmul.u32 %v280, %v282
    %v287 = vshll.u32 %v284, 16
    %v288 = vshrl.u32 %v284, 16
    %v289 = vshll.u32 %v285, 16
    %v290 = vshrl.u32 %v285, 16
    %vm291 = vc.u32 %v283, %v287
    %v292 = vsel %vm291, 1, 0
    %v293 = vadd.s32 %v283, %v287
    %v294 = vadd.s32 %v286, %v292
    %vm295 = vc.u32 %v293, %v289
    %v296 = vsel %vm295, 1, 0
    %v297 = vadd.s32 %v293, %v289
    %v298 = vadd.s32 %v294, %v296
    %v299 = vadd.s32 %v298, %v288
    %v300 = vadd.s32 %v299, %v290
    %v301 = vmul.u32 %v256, %v247
    %v302 = vadd.s32 %v278, %v297
    %vm303 = vc.u32 %v278, %v297
    %v304 = vadd.s32 %v300, 1
    %v305 = vsel %vm303, %v304, %v300
    %v306 = vadd.s32 %v301, %v305
    %v307 = vadd.s32 %v306, 536870912
    %v308 = vshrl.u32 %v307, 30
    %v309 = vshll.u32 %v308, 30
    %v310 = vsub.s32 %v306, %v309
    %vm311 = vcmp.lt.s32.totalorder %v310, 0
    %v312 = vsub.s32 0, %v310
    %v313 = vsel %vm311, %v312, %v310
    %v314 = vclz %v313
    %v315 = vsub.s32 %v314, 2
    %vm316 = vcmp.gt.s32.totalorder 0, %v315
    %v317 = vsel %vm316, 0, %v315
    %v318 = vsub.s32 32, %v317
    %v319 = vshll.u32 %v310, %v317
    %v320 = vshrl.u32 %v302, %v318
    %v321 = vor.u32 %v319, %v320
    %v322 = vsub.s32 4294967266, %v317
    %v323 = vadd.s32 %v322, 127
    %v324 = vshll.u32 %v323, 23
    %v325 = vor.u32 4788187, %v324
    %v326 = vand.u32 2147483647, %v325
    %v328 = vcvt.s32.f32 %v321
    %v329 = vmul.f32 %v328, %v326
    %v330 = vxor.u32 %v329, 2147483648
    %v331 = vsel %vm210, %v330, %v329
    %v332 = vsub.s32 4, %v308
    %v333 = vsel %vm210, %v332, %v308
    %v334 = vsel %vm209, %v206, %v331
    %v335 = vsel %vm209, 0, %v333
    %v336 = vmul.f32 %v334, %v334
    %v337 = vmul.f32 %v336, -0.001358992
    %v338 = vadd.f32 %v337, 0.041655596
    %v339 = vmul.f32 %v336, %v338
    %v340 = vadd.f32 %v339, -0.4999988
    %v341 = vmul.f32 %v336, %v340
    %v342 = vadd.f32 1.0, %v341
    %v343 = vmul.f32 %v334, %v334
    %v344 = vmul.f32 %v343, -0.00019511016
    %v345 = vadd.f32 %v344, 0.008332121
    %v346 = vmul.f32 %v343, %v345
    %v347 = vadd.f32 %v346, -0.16666654
    %v348 = vmul.f32 %v343, %v347
    %v349 = vadd.f32 %v348, 1.0
    %v350 = vmul.f32 %v349, %v334
    %vm351 = vweird.f32 %v206
    %v352 = vadd.s32 %v335, 3
    %v353 = vand.u32 %v352, 3
    %vm354 = vcmp.lt.s32.totalorder %v353, 2
    %vm355 = vcmp.eq.s32.totalorder %v353, 0
    %v356 = vxor.u32 %v350, 2147483648
    %v357 = vsel %vm355, %v342, %v356
    %vm358 = vcmp.eq.s32.totalorder %v353, 2
    %v359 = vxor.u32 %v342, 2147483648
    %v360 = vsel %vm358, %v359, %v350
    %v361 = vsel %vm354, %v357, %v360
    %v362 = vsel %vm351, nan, %v361
    %363 = vst [vmem:[#allocation7] sm:$0xff] %v362
    // Predicated region
    $region18: #{tpu_custom_call.1} parent=1 // pred_check
      _
    $region19: #{tpu_custom_call.1} parent=1 // pred_check_branch
      %365 = sbr.rel (0) target = $region21
    $region20: #{tpu_custom_call.1} parent=1 // pred_region
      %367 = vsyncadd [#allocation4], 0
      %s369 = sshll.u32 [#allocation7], 4
      %s370 = int_to_ptr.vmem [resolvable:$true] %s369
      %s371 = sshll.u32 %s2, 4
      %s372 = int_to_ptr.hbm [resolvable:$true] %s371
      %374 = dma.vmem_to_hbm [thread:$0]  %s370, 128, %s372, [#allocation4]
    $region21: #{tpu_custom_call.1} parent=1 // pred_fallthru
      _
    // Predicated region
    $region22: #{tpu_custom_call.1} parent=1 // pred_check
      _
    $region23: #{tpu_custom_call.1} parent=1 // pred_check_branch
      %376 = sbr.rel (0) target = $region25
    $region24: #{tpu_custom_call.1} parent=1 // pred_region
      %378 = dma.done [#allocation4], 128
    $region25: #{tpu_custom_call.1} parent=1 // pred_fallthru
      _
    %379 = vsyncpa [#allocation3], 1
    %380 = vsyncpa [#allocation6], 1
    %381 = vsyncpa [#allocation4], 1

</llo_original>
